<compile_context>
chip_gen: v6e
topology: v6e:2x2x1
jax: 0.10.0
libtpu: 0.0.40
codegen_flags: <defaults>
</compile_context>

<pallas_src>
import jax
import jax.numpy as jnp
from jax.experimental import pallas as pl
from jax.experimental.pallas import tpu as pltpu


def _netlin_kernel(x_ref, w_ref, o_ref):
    # x_ref: (Bt, C_in, TP)   input tile  — channels on sublanes, pixels on lanes
    # w_ref: (C_in, C_out)    f32 weight, resident every step (tiny)
    # o_ref: (Bt, C_out, TP)  output tile — lane-dense along pixels
    c_in, c_out = w_ref.shape
    if c_out == 1:
        # Single VPU pass: lane-broadcast the per-channel weights, multiply
        # (promotes to f32 against the f32 weight — no explicit full-tile f32
        # copy), reduce over the channel/sublane axis (XLU).
        w_col = w_ref[...].reshape(1, c_in, 1)                  # (1, C_in, 1)
        o_ref[...] = jnp.sum(x_ref[...] * w_col, axis=1,
                             keepdims=True).astype(o_ref.dtype)
    else:
        # General C_out (non-default): load x once; one reduction pass per
        # output channel. Stays off the MXU deliberately.
        x = x_ref[...]
        rows = [
            jnp.sum(x * w_ref[:, o:o + 1].reshape(1, c_in, 1), axis=1,
                    keepdims=True)
            for o in range(c_out)
        ]
        o_ref[...] = jnp.concatenate(rows, axis=1).astype(o_ref.dtype)


def _default_tile_budget_bytes():
    """Target ~4-8 MiB per input tile; go bigger only on 128 MiB-VMEM chips."""
    try:
        info = pltpu.get_tpu_info()
        vmem = getattr(info, "vmem_capacity_bytes", None)
        if vmem is not None and vmem >= 128 * 1024 * 1024:      # v5e / v6e
            return 8 * 1024 * 1024
    except Exception:
        pass
    return 4 * 1024 * 1024                                      # safe for v7x (64 MiB)


def netlin_layer(x_nchw, weight, *, tile_budget_bytes=None):
    """Forward pass of NetLinLayer (Dropout treated as identity).

    x_nchw : (B, C_in, H, W)      float32 or bfloat16
    weight : (C_out, C_in, 1, 1)  PyTorch Conv2d weight layout (no bias)
    returns: (B, C_out, H, W)     same dtype as x_nchw
    """
    B, C_in, H, W = x_nchw.shape
    C_out = weight.shape[0]
    P = H * W
    itemsize = jnp.dtype(x_nchw.dtype).itemsize
    if tile_budget_bytes is None:
        tile_budget_bytes = _default_tile_budget_bytes()

    # Zero-copy views; tiny weight cast to f32 (guarantees f32 accumulation).
    x = x_nchw.reshape(B, C_in, P)                           # (B, C_in, P)
    w = weight.reshape(C_out, C_in).T.astype(jnp.float32)    # (C_in, C_out)

    # ---- pixel tile: fill the byte budget; multiple of 128 (or full P) ----
    row_bytes = C_in * itemsize
    max_lanes = max(128, tile_budget_bytes // row_bytes)
    if P <= max_lanes:
        tile_p = P
    else:
        tile_p = max(128, (max_lanes // 128) * 128)

    # ---- batch tile: deep layers with small P get several images per DMA ----
    if tile_p == P:
        bt = max(1, min(B, tile_budget_bytes // max(1, C_in * P * itemsize)))
        while B % bt != 0:            # keep full batch blocks (B is small)
            bt -= 1
    else:
        bt = 1

    grid_b = pl.cdiv(B, bt)
    grid_p = pl.cdiv(P, tile_p)

    # ---- guarantee >= 2 grid steps so both v7x TensorCores are fed ----
    if grid_b * grid_p < 2:
        if P >= 256:
            tile_p = pl.cdiv(pl.cdiv(P, 2), 128) * 128
            grid_p = pl.cdiv(P, tile_p)
        elif bt > 1:
            bt = max(1, bt // 2)
            while B % bt != 0:
                bt -= 1
            grid_b = pl.cdiv(B, bt)
        # else: a single tiny tile — nothing worth splitting.

    # ---- VMEM limit from the actual footprint (cap for v7x's 64 MiB) ----
    tile_in = bt * C_in * tile_p * itemsize
    tile_out = bt * C_out * tile_p * itemsize
    w_buf = C_in * ((C_out + 127) // 128) * 128 * 4           # lane-padded f32 weight
    vmem_limit = (2 * tile_in                 # double-buffered input
                  + 2 * tile_out              # double-buffered output
                  + 2 * w_buf                 # weight buffers
                  + bt * C_in * tile_p * 4    # f32 product/reduce temporary
                  + (4 << 20))                # slack
    vmem_limit = int(min(max(vmem_limit, 16 << 20), 48 << 20))

    out = pl.pallas_call(
        _netlin_kernel,
        out_shape=jax.ShapeDtypeStruct((B, C_out, P), x_nchw.dtype),
        grid_spec=pltpu.PrefetchScalarGridSpec(
            num_scalar_prefetch=0,
            grid=(grid_b, grid_p),
            in_specs=[
                # input tile: bt images, all channels, tile_p pixels
                pl.BlockSpec((bt, C_in, tile_p), lambda b, p: (b, 0, p)),
                # weight: full array, same (constant) block every step
                pl.BlockSpec((C_in, C_out), lambda b, p: (0, 0)),
            ],
            out_specs=pl.BlockSpec((bt, C_out, tile_p), lambda b, p: (b, 0, p)),
        ),
        compiler_params=pltpu.CompilerParams(
            dimension_semantics=("parallel", "parallel"),
            vmem_limit_bytes=vmem_limit,
        ),
    )(x, w)

    # (B, C_out, H*W) -> (B, C_out, H, W): free reshape, already NCHW.
    return out.reshape(B, C_out, H, W)


def _reference(x_nchw, weight):
    C_out, C_in = weight.shape[0], weight.shape[1]
    return jnp.einsum("bchw,oc->bohw", x_nchw, weight.reshape(C_out, C_in))


if __name__ == "__main__":
    key = jax.random.PRNGKey(0)
    k1, k2, k3, k4, k5, k6 = jax.random.split(key, 6)

    # Test 1: module-default head (C_out=1), small LPIPS-like shape.
    x1 = jax.random.normal(k1, (2, 4, 16, 16), jnp.float32)
    w1 = jax.random.normal(k2, (1, 4, 1, 1), jnp.float32) * 0.1
    o1 = jax.block_until_ready(netlin_layer(x1, w1))
    assert o1.shape == (2, 1, 16, 16), o1.shape
    assert jnp.allclose(o1, _reference(x1, w1), atol=1e-5, rtol=1e-5)

    # Test 2: P not a multiple of 128 + forced multi-tile (partial last tile).
    x2 = jax.random.normal(k3, (2, 4, 20, 20), jnp.float32)
    w2 = jax.random.normal(k4, (1, 4, 1, 1), jnp.float32) * 0.1
    o2 = jax.block_until_ready(netlin_layer(x2, w2, tile_budget_bytes=2048))
    assert o2.shape == (2, 1, 20, 20), o2.shape
    assert jnp.allclose(o2, _reference(x2, w2), atol=1e-5, rtol=1e-5)

    # Test 3: C_out > 1 path with a batch-blocked deep-layer style tile.
    x3 = jax.random.normal(k5, (2, 8, 8, 8), jnp.float32)
    w3 = jax.random.normal(k6, (3, 8, 1, 1), jnp.float32) * 0.1
    o3 = jax.block_until_ready(netlin_layer(x3, w3))
    assert o3.shape == (2, 3, 8, 8), o3.shape
    assert jnp.allclose(o3, _reference(x3, w3), atol=1e-5, rtol=1e-5)

    # TODO(synk): nn.Dropout train-mode masking is intentionally omitted
    # (identity under eval semantics, matching LPIPS inference usage).
    print("KERNEL_OK")
</pallas_src>

<mosaic_0001>
module attributes {stable_mosaic.version = 11 : i64} {
  func.func @_netlin_kernel(%arg0: i32, %arg1: i32, %arg2: memref<2x4x128xf32, #tpu.memory_space<vmem>>, %arg3: memref<4x1xf32, #tpu.memory_space<vmem>>, %arg4: memref<2x1x128xf32, #tpu.memory_space<vmem>>) attributes {dimension_semantics = [#tpu.dimension_semantics<parallel>, #tpu.dimension_semantics<parallel>], iteration_bounds = array<i64: 1, 2>, scalar_prefetch = 0 : i64, scratch_operands = 0 : i64, tpu.core_type = #tpu.core_type<tc>, window_params = [{transform_indices = @transform_0, window_bounds = array<i64: 2, 4, 128>}, {pipeline_mode = #tpu.pipeline_mode<synchronous>, transform_indices = @transform_1, window_bounds = array<i64: 4, 1>}, {transform_indices = @transform_2, window_bounds = array<i64: 2, 1, 128>}]} {
    %c0 = arith.constant 0 : index
    %c0_0 = arith.constant 0 : index
    %0 = vector.load %arg3[%c0, %c0_0] : memref<4x1xf32, #tpu.memory_space<vmem>>, vector<4x1xf32>
    %1 = vector.shape_cast %0 : vector<4x1xf32> to vector<1x4x1xf32>
    %c0_1 = arith.constant 0 : index
    %c0_2 = arith.constant 0 : index
    %c0_3 = arith.constant 0 : index
    %2 = vector.load %arg2[%c0_1, %c0_2, %c0_3] : memref<2x4x128xf32, #tpu.memory_space<vmem>>, vector<2x4x128xf32>
    %3 = vector.broadcast %1 : vector<1x4x1xf32> to vector<2x4x128xf32>
    %4 = arith.mulf %2, %3 : vector<2x4x128xf32>
    %cst = arith.constant dense<0.000000e+00> : vector<2x128xf32>
    %5 = vector.multi_reduction <add>, %4, %cst [1] : vector<2x4x128xf32> to vector<2x128xf32>
    %6 = vector.shape_cast %5 : vector<2x128xf32> to vector<2x1x128xf32>
    %c0_4 = arith.constant 0 : index
    %c0_5 = arith.constant 0 : index
    %c0_6 = arith.constant 0 : index
    %7 = vector.load %arg4[%c0_4, %c0_5, %c0_6] : memref<2x1x128xf32, #tpu.memory_space<vmem>>, vector<2x1x128xf32>
    tpu.vector_store %arg4[%c0_4, %c0_5, %c0_6], %6 {strides = array<i32>} : memref<2x1x128xf32, #tpu.memory_space<vmem>>, vector<2x1x128xf32>,
    return
  }
  func.func @transform_0(%arg0: i32, %arg1: i32) -> (i32, i32, i32) {
    %c0_i32 = arith.constant 0 : i32
    %c0_i32_0 = arith.constant 0 : i32
    return %arg0, %c0_i32, %arg1 : i32, i32, i32
  }
  func.func @transform_1(%arg0: i32, %arg1: i32) -> (i32, i32) {
    %c0_i32 = arith.constant 0 : i32
    %c0_i32_0 = arith.constant 0 : i32
    %c0_i32_1 = arith.constant 0 : i32
    return %c0_i32, %c0_i32_0 : i32, i32
  }
  func.func @transform_2(%arg0: i32, %arg1: i32) -> (i32, i32, i32) {
    %c0_i32 = arith.constant 0 : i32
    %c0_i32_0 = arith.constant 0 : i32
    return %arg0, %c0_i32, %arg1 : i32, i32, i32
  }
}

</mosaic_0001>

<llo_original>
// kernel: tpu_custom_call.1
$region0: #{tpu_custom_call.1}
  #allocation0 [shape = 'u32[]', space=smem, size = 0x4, offset = 0x4, fixed_abs, tag = 'smem constant byte address 0x4 - core index']
  #allocation1 [shape = 'u32[144,128]{1,0:T(1,128)}', space=vmem, size = 0x12000, scoped, tag = 'internal scratch']
  %s0 = inlined_call_operand.hbm [shape: f32[2,4,256], index: 0, kind: input, shape index: {}]
  %s1 = inlined_call_operand.vmem [shape: f32[4,1], index: 1, kind: input, shape index: {}]
  %s2 = inlined_call_operand.hbm [shape: f32[2,1,256], index: 2, kind: output, shape index: {}]
  %s3 = sld [smem:[#allocation0]]
  $region45: #{tpu_custom_call.1} parent=0
    _
  %s5 = ssub.s32 1, %s3
  %s6 = scalar_select 0, %s5, %s3
  $region1: #{tpu_custom_call.1} parent=0
    #allocation2 [shape = 'u8[8192]{0}', space=vmem, size = 0x2000, scoped, tag = 'input window, operand 0']
    #allocation3 [shape = 's32[2]{0}', space=sflag, size = 0x8, scoped, tag = 'scoped memory for tpu_custom_call.1']
    #allocation4 [shape = 's32[2]{0}', space=sflag, size = 0x8, scoped, tag = 'scoped memory for tpu_custom_call.1']
    #allocation5 [shape = 'u8[2048]{0}', space=vmem, size = 0x800, scoped, tag = 'output window, operand 0']
    %7 = vsyncpa [#allocation3], 0
    %s8 = scalar_lea.sflag [#allocation3], 1
    %9 = vsyncpa %s8, 0
    %10 = vsyncpa [#allocation4], 0
    %s11 = scalar_lea.sflag [#allocation4], 1
    %12 = vsyncpa %s11, 0
    loop: start=0, step=1, limit=4
    $region2: #{tpu_custom_call.1} parent=1 // loop_pre_header
      _
    $region3: #{tpu_custom_call.1} parent=1 // loop_header
      %s14 = sphi 0, %s18
      %p15 = scmp.ge.s32.totalorder %s14, 4
      %s21 = sphi 0, %s33
      %s22 = sphi 0, %s29
      %s23 = sphi 0, %s21
      %s24 = sphi 0, %s22
      %s25 = sphi 0, %s23
      %s26 = sphi 0, %s24
      %s38 = sphi 0, %s40
      %s41 = sphi 0, %s38
      %s42 = sphi 0, %s41
      %s58 = sphi 0, %s42
      %s62 = sphi 0, %s62
      %s64 = sphi 0, %s62
      %s65 = sphi 0, %s64
      %s79 = sphi 0, %s65
      %s87 = sphi 0, %s89
      %s90 = sphi 0, %s87
      %s91 = sphi 0, %s90
      %s107 = sphi 0, %s91
    $region4: #{tpu_custom_call.1} parent=1 // loop_header_branch
      %17 = sbr.rel (%p15) target = $region8
    $region5: #{tpu_custom_call.1} parent=1 // loop_body
      %s19 = ssub.s32 %s14, 1
      %s20 = ssub.s32 %s14, 2
      %s27 = sadd.s32 1, %s22
      %p28 = scmp.ge.s32.totalorder %s27, 2
      %s29 = scalar_select %p28, 0, %s27
      %s30 = sadd.s32 1, %s21
      %s31 = scalar_select %p28, %s30, %s21
      %p32 = scmp.ge.s32.totalorder %s31, 1
      %s33 = scalar_select %p32, 0, %s31
      %s34 = ssub.s32 %s21, %s33
      %s35 = ssub.s32 %s22, %s29
      %s36 = sor.u32 %s34, %s35
      %p37 = scmp.eq.s32.totalorder %s36, 0
      %s39 = sadd.s32 %s38, 1
      %s40 = scalar_select %p37, %s38, %s39
      %p43 = pneg %p37
      %p44 = scmp.eq.s32.totalorder %s14, 1
      %p45 = por %p43, %p44
      %p46 = scmp.ne.s32.totalorder %s38, %s41
      %p47 = scmp.eq.s32.totalorder %s14, 0
      %p48 = por %p46, %p47
      %p49 = scmp.ne.s32.totalorder %s38, %s41
      %p50 = scmp.eq.s32.totalorder %s19, 1
      %p51 = por %p49, %p50
      %p52 = scmp.ne.s32.totalorder %s41, %s42
      %p53 = scmp.eq.s32.totalorder %s19, 0
      %p54 = por %p52, %p53
      %p55 = scmp.ne.s32.totalorder %s41, %s42
      %p56 = scmp.eq.s32.totalorder %s20, 1
      %p57 = por %p55, %p56
      %p59 = scmp.ne.s32.totalorder %s42, %s58
      %p60 = scmp.eq.s32.totalorder %s20, 0
      %p61 = por %p59, %p60
      %s63 = sadd.s32 %s62, 1
      %p66 = scmp.eq.s32.totalorder %s14, 1
      %p67 = scmp.ne.s32.totalorder %s62, %s64
      %p68 = scmp.eq.s32.totalorder %s14, 0
      %p69 = por %p67, %p68
      %p70 = scmp.ne.s32.totalorder %s62, %s64
      %p71 = scmp.eq.s32.totalorder %s19, 1
      %p72 = por %p70, %p71
      %p73 = scmp.ne.s32.totalorder %s64, %s65
      %p74 = scmp.eq.s32.totalorder %s19, 0
      %p75 = por %p73, %p74
      %p76 = scmp.ne.s32.totalorder %s64, %s65
      %p77 = scmp.eq.s32.totalorder %s20, 1
      %p78 = por %p76, %p77
      %p80 = scmp.ne.s32.totalorder %s65, %s79
      %p81 = scmp.eq.s32.totalorder %s20, 0
      %p82 = por %p80, %p81
      %s83 = ssub.s32 %s21, %s33
      %s84 = ssub.s32 %s22, %s29
      %s85 = sor.u32 %s83, %s84
      %p86 = scmp.eq.s32.totalorder %s85, 0
      %s88 = sadd.s32 %s87, 1
      %s89 = scalar_select %p86, %s87, %s88
      %p92 = pneg %p86
      %p93 = scmp.eq.s32.totalorder %s14, 1
      %p94 = por %p92, %p93
      %p95 = scmp.ne.s32.totalorder %s87, %s90
      %p96 = scmp.eq.s32.totalorder %s14, 0
      %p97 = por %p95, %p96
      %p98 = scmp.ne.s32.totalorder %s87, %s90
      %p99 = scmp.eq.s32.totalorder %s19, 1
      %p100 = por %p98, %p99
      %p101 = scmp.ne.s32.totalorder %s90, %s91
      %p102 = scmp.eq.s32.totalorder %s19, 0
      %p103 = por %p101, %p102
      %p104 = scmp.ne.s32.totalorder %s90, %s91
      %p105 = scmp.eq.s32.totalorder %s20, 1
      %p106 = por %p104, %p105
      %p108 = scmp.ne.s32.totalorder %s91, %s107
      %p109 = scmp.eq.s32.totalorder %s20, 0
      %p110 = por %p108, %p109
      %p111 = scmp.le.s32.totalorder 1, %s14
      %p112 = scmp.lt.s32.totalorder %s14, 3
      %p113 = pnand %p111, %p112
      %p114 = pneg %p113
      // Predicated region
      $region9: #{tpu_custom_call.1} parent=5 // pred_check
        _
      $region10: #{tpu_custom_call.1} parent=5 // pred_check_branch
        %116 = sbr.rel (%p113) target = $region12
      $region11: #{tpu_custom_call.1} parent=5 // pred_region
        %s117 = ssub.s32 %s14, 1
        // Predicated region
        $region13: #{tpu_custom_call.1} parent=11 // pred_check
          %p118 = pneg %p75
        $region14: #{tpu_custom_call.1} parent=11 // pred_check_branch
          %120 = sbr.rel (%p118) target = $region16
        $region15: #{tpu_custom_call.1} parent=11 // pred_region
          _
        $region16: #{tpu_custom_call.1} parent=11 // pred_fallthru
          _
      $region12: #{tpu_custom_call.1} parent=5 // pred_fallthru
        _
      %p121 = scmp.lt.s32.totalorder %s14, 2
      // Predicated region
      $region17: #{tpu_custom_call.1} parent=5 // pred_check
        %p122 = pneg %p121
      $region18: #{tpu_custom_call.1} parent=5 // pred_check_branch
        %124 = sbr.rel (%p122) target = $region20
      $region19: #{tpu_custom_call.1} parent=5 // pred_region
        // Predicated region
        $region21: #{tpu_custom_call.1} parent=19 // pred_check
          %p125 = pneg %p48
        $region22: #{tpu_custom_call.1} parent=19 // pred_check_branch
          %127 = sbr.rel (%p125) target = $region24
        $region23: #{tpu_custom_call.1} parent=19 // pred_region
          %s128 = sand.u32 %s38, 1
          %s129 = scalar_lea.sflag [#allocation3], %s128
          %s130 = sand.u32 %s38, 1
          %s131 = smul.addr %s130, 8
          %s132 = scalar_lea.vmem [#allocation2], %s131
          %s133 = smul.u32 2, %s21
          %s135 = ssub.s32 128, 128
          %136 = vsyncadd %s129, %s135
          %s137 = smul.addr %s133, 2
          %s138 = sadd.s32 %s22, %s137
          %s139 = smul.addr %s138, 64
          %s140 = scalar_lea.hbm %s0, %s139
          %s141 = sshll.u32 %s132, 4
          %s142 = int_to_ptr.vmem [resolvable:$true] %s141
          %147 = dma.hbm_to_vmem [thread:$0]  %s140, 128, %s142, %s129, 128, 64, 4
        $region24: #{tpu_custom_call.1} parent=19 // pred_fallthru
          _
      $region20: #{tpu_custom_call.1} parent=5 // pred_fallthru
        _
      %p148 = scmp.le.s32.totalorder 1, %s14
      %p149 = scmp.lt.s32.totalorder %s14, 3
      %p150 = pnand %p148, %p149
      %p151 = pneg %p150
      // Predicated region
      $region25: #{tpu_custom_call.1} parent=5 // pred_check
        _
      $region26: #{tpu_custom_call.1} parent=5 // pred_check_branch
        %153 = sbr.rel (%p150) target = $region28
      $region27: #{tpu_custom_call.1} parent=5 // pred_region
        %s154 = ssub.s32 %s14, 1
        %s155 = sand.u32 %s41, 1
        %s156 = scalar_lea.sflag [#allocation3], %s155
        %s157 = sand.u32 %s41, 1
        %s158 = smul.addr %s157, 8
        %s159 = scalar_lea.vmem [#allocation2], %s158
        // Predicated region
        $region29: #{tpu_custom_call.1} parent=27 // pred_check
          %p160 = pneg %p54
        $region30: #{tpu_custom_call.1} parent=27 // pred_check_branch
          %162 = sbr.rel (%p160) target = $region32
        $region31: #{tpu_custom_call.1} parent=27 // pred_region
          %163 = dma.done %s156, 128
        $region32: #{tpu_custom_call.1} parent=27 // pred_fallthru
          _
        %s164 = sand.u32 %s41, 1
        %s165 = scalar_lea.sflag [#allocation3], %s164
        %s166 = sand.u32 %s41, 1
        %s167 = smul.addr %s166, 8
        %s168 = scalar_lea.vmem [#allocation2], %s167
        %p169 = pneg %p54
        %p170 = pneg %p51
        %p171 = pneg %p75
        %p172 = pneg %p72
        %p173 = pneg %p103
        %p174 = pneg %p100
        %s175 = sand.u32 %s90, 1
        %s176 = scalar_lea.sflag [#allocation4], %s175
        %s177 = sand.u32 %s90, 1
        %s178 = smul.addr %s177, 2
        %s179 = scalar_lea.vmem [#allocation5], %s178
        %s180 = smul.u32 2, %s23
        %s181 = smul.u32 2, %s23
        %v182 = vld [vmem:[%s1] sm:$0xf]
        %v183 = vld [vmem:[%s159] sm:$0xf]
        %v184 = vld [vmem:[%s159 + $0x4] sm:$0xf]
        %186 = vset.pattern.permute.xlu0 0
        %187 = vperm.xlu0 %186, %v182
        %v188 = vpop.permute.xlu0 %187
        %v190 = vmul.f32 %v183, %v188
        %v191 = vmul.f32 %v184, %v188
        %vm192 = vcmask 1043456
        %v193 = vsel %vm192, %v190, 0.0
        %v194 = vrot.slane %v193, 4
        %v195 = vadd.f32 %v193, %v194
        %v196 = vrot.slane %v195, 2
        %v197 = vadd.f32 %v195, %v196
        %v198 = vrot.slane %v197, 1
        %v199 = vadd.f32 %v197, %v198
        %v200 = vsel %vm192, %v191, 0.0
        %v201 = vrot.slane %v200, 4
        %v202 = vadd.f32 %v200, %v201
        %v203 = vrot.slane %v202, 2
        %v204 = vadd.f32 %v202, %v203
        %v205 = vrot.slane %v204, 1
        %v206 = vadd.f32 %v204, %v205
        %207 = vst [vmem:[%s179] sm:$0x1] %v199
        %208 = vst [vmem:[%s179 + $0x1] sm:$0x1] %v206
        %s209 = sand.u32 %s90, 1
        %s210 = scalar_lea.sflag [#allocation4], %s209
        %s211 = sand.u32 %s90, 1
        %s212 = smul.addr %s211, 2
        %s213 = scalar_lea.vmem [#allocation5], %s212
        // Predicated region
        $region33: #{tpu_custom_call.1} parent=27 // pred_check
          %p214 = pneg %p100
        $region34: #{tpu_custom_call.1} parent=27 // pred_check_branch
          %216 = sbr.rel (%p214) target = $region36
        $region35: #{tpu_custom_call.1} parent=27 // pred_region
          %s217 = smul.u32 2, %s23
          %s219 = ssub.s32 32, 32
          %220 = vsyncadd %s210, %s219
          %s221 = smul.addr %s217, 2
          %s222 = sadd.s32 %s24, %s221
          %s223 = smul.addr %s222, 16
          %s224 = scalar_lea.hbm %s2, %s223
          %s225 = sshll.u32 %s213, 4
          %s226 = int_to_ptr.vmem [resolvable:$true] %s225
          %231 = dma.vmem_to_hbm [thread:$0]  %s226, 32, %s224, %s210, 16, 32, 1
        $region36: #{tpu_custom_call.1} parent=27 // pred_fallthru
          _
      $region28: #{tpu_custom_call.1} parent=5 // pred_fallthru
        _
      %p232 = scmp.le.s32.totalorder 2, %s14
      // Predicated region
      $region37: #{tpu_custom_call.1} parent=5 // pred_check
        %p233 = pneg %p232
      $region38: #{tpu_custom_call.1} parent=5 // pred_check_branch
        %235 = sbr.rel (%p233) target = $region40
      $region39: #{tpu_custom_call.1} parent=5 // pred_region
        %s236 = ssub.s32 %s14, 2
        // Predicated region
        $region41: #{tpu_custom_call.1} parent=39 // pred_check
          %p237 = pneg %p106
        $region42: #{tpu_custom_call.1} parent=39 // pred_check_branch
          %239 = sbr.rel (%p237) target = $region44
        $region43: #{tpu_custom_call.1} parent=39 // pred_region
          %s240 = sand.u32 %s91, 1
          %s241 = scalar_lea.sflag [#allocation4], %s240
          %s242 = sand.u32 %s91, 1
          %s243 = smul.addr %s242, 2
          %s244 = scalar_lea.vmem [#allocation5], %s243
          %245 = dma.done %s241, 32
        $region44: #{tpu_custom_call.1} parent=39 // pred_fallthru
          _
      $region40: #{tpu_custom_call.1} parent=5 // pred_fallthru
        _
    $region6: #{tpu_custom_call.1} parent=1 // loop_footer
      %s18 = sadd.s32 1, %s14
    $region7: #{tpu_custom_call.1} parent=1 // loop_footer_branch
      %13 = sbr.rel target = $region3
    $region8: #{tpu_custom_call.1} parent=1 // loop_exit
      _
    %246 = vsyncpa [#allocation3], 1
    %s247 = scalar_lea.sflag [#allocation3], 1
    %248 = vsyncpa %s247, 1
    %249 = vsyncpa [#allocation4], 1
    %s250 = scalar_lea.sflag [#allocation4], 1
    %251 = vsyncpa %s250, 1

</llo_original>
